<compile_context>
chip_gen: v5e
topology: v5e:2x2
jax: 0.10.0
libtpu: 0.0.40
codegen_flags: <defaults>
</compile_context>

<pallas_src>
import jax
import jax.numpy as jnp
from jax.experimental import pallas as pl
from jax.experimental.pallas import tpu as pltpu

LANE = 128
SUBLANE = 8


def _round_up(n, m):
    return ((n + m - 1) // m) * m


def subnet_kernel(x_ref, w1_ref, b1_ref, w2_ref, b2_ref, w3_ref, b3_ref,
                  y2_ref, y3_ref):
    # dropout is identity at inference time (deterministic forward).
    x = x_ref[...]                                    # bf16 (TM, K)

    # linear_1 + tanh : bf16 matmul, f32 accumulate, f32 bias/tanh
    y1 = jnp.tanh(
        jnp.dot(x, w1_ref[...], preferred_element_type=jnp.float32)
        + b1_ref[...])

    # linear_2 + tanh  (the unused `fusion` matmul is skipped)
    y2 = jnp.tanh(
        jnp.dot(y1.astype(jnp.bfloat16), w2_ref[...],
                preferred_element_type=jnp.float32)
        + b2_ref[...])
    y2_ref[...] = y2.astype(y2_ref.dtype)

    # linear_3 (no activation)
    y3 = (jnp.dot(y2.astype(jnp.bfloat16), w3_ref[...],
                  preferred_element_type=jnp.float32)
          + b3_ref[...])
    y3_ref[...] = y3.astype(y3_ref.dtype)


def subnet_forward(x, params, *, max_batch_tile=1024):
    """x: (batch, in_size) f32. params: dict of f32 (w1,b1,w2,b2,w3,b3),
    weights stored as (in_features, out_features)."""
    batch, in_size = x.shape
    hidden = params["w1"].shape[1]
    n_class = params["w3"].shape[1]

    # Lane-dense padded feature dims (multiples of 128).
    K = _round_up(in_size, LANE)
    H = _round_up(hidden, LANE)
    C = _round_up(n_class, LANE)

    # Batch tile: one grid point for tiny batches, big tiles otherwise
    # (weights are tiny, so VMEM budget is dominated by the batch tiles).
    TM = min(max_batch_tile, _round_up(batch, SUBLANE))
    B = _round_up(batch, TM)
    grid = (B // TM,)

    def pad2(a, shape, dtype):
        out = jnp.zeros(shape, dtype)
        return out.at[: a.shape[0], : a.shape[1]].set(a.astype(dtype))

    # Zero padding keeps the math exact: padded input lanes hit zero weight
    # rows, padded bias lanes are zero, tanh(0)=0 feeds zero rows of the next
    # weight, and padded output lanes/rows are sliced off below.
    x_p = pad2(x, (B, K), jnp.bfloat16)
    w1 = pad2(params["w1"], (K, H), jnp.bfloat16)
    w2 = pad2(params["w2"], (H, H), jnp.bfloat16)
    w3 = pad2(params["w3"], (H, C), jnp.bfloat16)
    b1 = pad2(params["b1"], (1, H), jnp.float32)
    b2 = pad2(params["b2"], (1, H), jnp.float32)
    b3 = pad2(params["b3"], (1, C), jnp.float32)

    tiled = lambda i: (i, 0)        # batch-tiled arrays
    resident = lambda i: (0, 0)     # weights/biases: VMEM-resident across grid

    y2_p, y3_p = pl.pallas_call(
        subnet_kernel,
        grid=grid,
        out_shape=(
            jax.ShapeDtypeStruct((B, H), jnp.float32),
            jax.ShapeDtypeStruct((B, C), jnp.float32),
        ),
        in_specs=[
            pl.BlockSpec((TM, K), tiled),     # x
            pl.BlockSpec((K, H), resident),   # w1
            pl.BlockSpec((1, H), resident),   # b1
            pl.BlockSpec((H, H), resident),   # w2
            pl.BlockSpec((1, H), resident),   # b2
            pl.BlockSpec((H, C), resident),   # w3
            pl.BlockSpec((1, C), resident),   # b3
        ],
        out_specs=(
            pl.BlockSpec((TM, H), tiled),     # y2
            pl.BlockSpec((TM, C), tiled),     # y3
        ),
        compiler_params=pltpu.CompilerParams(
            dimension_semantics=("parallel",)),
    )(x_p, w1, b1, w2, b2, w3, b3)

    return y2_p[:batch, :hidden], y3_p[:batch, :n_class]


def init_params(key, in_size, hidden_size, n_class):
    """Deterministic init mimicking nn.Linear (uniform +-1/sqrt(fan_in)).
    Weights stored as (in, out) for direct x @ W."""
    k1, k2, k3, k4, k5, k6 = jax.random.split(key, 6)

    def lin(kw, kb, fan_in, fan_out):
        bound = 1.0 / jnp.sqrt(jnp.float32(fan_in))
        w = jax.random.uniform(kw, (fan_in, fan_out), jnp.float32, -bound, bound)
        b = jax.random.uniform(kb, (1, fan_out), jnp.float32, -bound, bound)
        return w, b

    w1, b1 = lin(k1, k2, in_size, hidden_size)
    w2, b2 = lin(k3, k4, hidden_size, hidden_size)
    w3, b3 = lin(k5, k6, hidden_size, n_class)
    return dict(w1=w1, b1=b1, w2=w2, b2=b2, w3=w3, b3=b3)


def subnet_reference(x, params):
    y1 = jnp.tanh(x @ params["w1"] + params["b1"])
    y2 = jnp.tanh(y1 @ params["w2"] + params["b2"])
    y3 = y2 @ params["w3"] + params["b3"]
    return y2, y3


if __name__ == "__main__":
    # TODO(synk): nn.Dropout is treated as identity (eval mode); training-mode
    # dropout would need pltpu.prng_seed/prng_random_bits masking in-kernel.

    # Small shapes consistent with SubNet: x is (batch, in_size)
    batch, in_size, hidden_size, n_class = 8, 16, 32, 4

    key = jax.random.PRNGKey(0)
    kx, kp = jax.random.split(key)
    x = jax.random.normal(kx, (batch, in_size), dtype=jnp.float32)
    params = init_params(kp, in_size, hidden_size, n_class)

    y2, y3 = subnet_forward(x, params)
    jax.block_until_ready((y2, y3))

    r2, r3 = subnet_reference(x, params)
    assert y2.shape == (batch, hidden_size) and y3.shape == (batch, n_class)
    # bf16 matmul inputs -> loose-ish tolerance against the f32 reference.
    assert jnp.allclose(y2, r2, atol=2e-2, rtol=2e-2), "y2 mismatch"
    assert jnp.allclose(y3, r3, atol=2e-2, rtol=2e-2), "y3 mismatch"

    # Exercise the multi-step batch grid + ragged-batch padding path.
    batch2 = 300
    x2 = jax.random.normal(jax.random.PRNGKey(1), (batch2, in_size),
                           dtype=jnp.float32)
    y2b, y3b = subnet_forward(x2, params, max_batch_tile=128)  # grid=(3,)
    jax.block_until_ready((y2b, y3b))
    r2b, r3b = subnet_reference(x2, params)
    assert y2b.shape == (batch2, hidden_size) and y3b.shape == (batch2, n_class)
    assert jnp.allclose(y2b, r2b, atol=2e-2, rtol=2e-2), "y2 (gridded) mismatch"
    assert jnp.allclose(y3b, r3b, atol=2e-2, rtol=2e-2), "y3 (gridded) mismatch"

    print("KERNEL_OK")
</pallas_src>

<mosaic_0001>
module attributes {stable_mosaic.version = 11 : i64} {
  func.func @subnet_kernel(%arg0: i32, %arg1: memref<8x128xbf16, #tpu.memory_space<vmem>>, %arg2: memref<128x128xbf16, #tpu.memory_space<vmem>>, %arg3: memref<1x128xf32, #tpu.memory_space<vmem>>, %arg4: memref<128x128xbf16, #tpu.memory_space<vmem>>, %arg5: memref<1x128xf32, #tpu.memory_space<vmem>>, %arg6: memref<128x128xbf16, #tpu.memory_space<vmem>>, %arg7: memref<1x128xf32, #tpu.memory_space<vmem>>, %arg8: memref<8x128xf32, #tpu.memory_space<vmem>>, %arg9: memref<8x128xf32, #tpu.memory_space<vmem>>) attributes {dimension_semantics = [#tpu.dimension_semantics<parallel>], iteration_bounds = array<i64: 1>, scalar_prefetch = 0 : i64, scratch_operands = 0 : i64, tpu.core_type = #tpu.core_type<tc>, window_params = [{transform_indices = @transform_0, window_bounds = array<i64: 8, 128>}, {pipeline_mode = #tpu.pipeline_mode<synchronous>, transform_indices = @transform_1, window_bounds = array<i64: 128, 128>}, {pipeline_mode = #tpu.pipeline_mode<synchronous>, transform_indices = @transform_2, window_bounds = array<i64: 1, 128>}, {pipeline_mode = #tpu.pipeline_mode<synchronous>, transform_indices = @transform_3, window_bounds = array<i64: 128, 128>}, {pipeline_mode = #tpu.pipeline_mode<synchronous>, transform_indices = @transform_4, window_bounds = array<i64: 1, 128>}, {pipeline_mode = #tpu.pipeline_mode<synchronous>, transform_indices = @transform_5, window_bounds = array<i64: 128, 128>}, {pipeline_mode = #tpu.pipeline_mode<synchronous>, transform_indices = @transform_6, window_bounds = array<i64: 1, 128>}, {transform_indices = @transform_7, window_bounds = array<i64: 8, 128>}, {transform_indices = @transform_8, window_bounds = array<i64: 8, 128>}]} {
    %c0 = arith.constant 0 : index
    %c0_0 = arith.constant 0 : index
    %0 = vector.load %arg1[%c0, %c0_0] : memref<8x128xbf16, #tpu.memory_space<vmem>>, vector<8x128xbf16>
    %c0_1 = arith.constant 0 : index
    %c0_2 = arith.constant 0 : index
    %1 = vector.load %arg2[%c0_1, %c0_2] : memref<128x128xbf16, #tpu.memory_space<vmem>>, vector<128x128xbf16>
    %cst = arith.constant dense<0.000000e+00> : vector<8x128xf32>
    %2 = tpu.matmul %0, %1, %cst {dimension_numbers = #tpu.dot_dimension_numbers<[1], [0], [0], [1], [0, 0, 1, 1], [], []>} : vector<8x128xbf16>, vector<128x128xbf16>, vector<8x128xf32> -> vector<8x128xf32>
    %c0_3 = arith.constant 0 : index
    %c0_4 = arith.constant 0 : index
    %3 = vector.load %arg3[%c0_3, %c0_4] : memref<1x128xf32, #tpu.memory_space<vmem>>, vector<1x128xf32>
    %4 = vector.broadcast %3 : vector<1x128xf32> to vector<8x128xf32>
    %5 = arith.addf %2, %4 : vector<8x128xf32>
    %6 = math.tanh %5 : vector<8x128xf32>
    %7 = arith.truncf %6 : vector<8x128xf32> to vector<8x128xbf16>
    %c0_5 = arith.constant 0 : index
    %c0_6 = arith.constant 0 : index
    %8 = vector.load %arg4[%c0_5, %c0_6] : memref<128x128xbf16, #tpu.memory_space<vmem>>, vector<128x128xbf16>
    %cst_7 = arith.constant dense<0.000000e+00> : vector<8x128xf32>
    %9 = tpu.matmul %7, %8, %cst_7 {dimension_numbers = #tpu.dot_dimension_numbers<[1], [0], [0], [1], [0, 0, 1, 1], [], []>} : vector<8x128xbf16>, vector<128x128xbf16>, vector<8x128xf32> -> vector<8x128xf32>
    %c0_8 = arith.constant 0 : index
    %c0_9 = arith.constant 0 : index
    %10 = vector.load %arg5[%c0_8, %c0_9] : memref<1x128xf32, #tpu.memory_space<vmem>>, vector<1x128xf32>
    %11 = vector.broadcast %10 : vector<1x128xf32> to vector<8x128xf32>
    %12 = arith.addf %9, %11 : vector<8x128xf32>
    %13 = math.tanh %12 : vector<8x128xf32>
    %c0_10 = arith.constant 0 : index
    %c0_11 = arith.constant 0 : index
    %14 = vector.load %arg8[%c0_10, %c0_11] : memref<8x128xf32, #tpu.memory_space<vmem>>, vector<8x128xf32>
    tpu.vector_store %arg8[%c0_10, %c0_11], %13 {strides = array<i32>} : memref<8x128xf32, #tpu.memory_space<vmem>>, vector<8x128xf32>,
    %15 = arith.truncf %13 : vector<8x128xf32> to vector<8x128xbf16>
    %c0_12 = arith.constant 0 : index
    %c0_13 = arith.constant 0 : index
    %16 = vector.load %arg6[%c0_12, %c0_13] : memref<128x128xbf16, #tpu.memory_space<vmem>>, vector<128x128xbf16>
    %cst_14 = arith.constant dense<0.000000e+00> : vector<8x128xf32>
    %17 = tpu.matmul %15, %16, %cst_14 {dimension_numbers = #tpu.dot_dimension_numbers<[1], [0], [0], [1], [0, 0, 1, 1], [], []>} : vector<8x128xbf16>, vector<128x128xbf16>, vector<8x128xf32> -> vector<8x128xf32>
    %c0_15 = arith.constant 0 : index
    %c0_16 = arith.constant 0 : index
    %18 = vector.load %arg7[%c0_15, %c0_16] : memref<1x128xf32, #tpu.memory_space<vmem>>, vector<1x128xf32>
    %19 = vector.broadcast %18 : vector<1x128xf32> to vector<8x128xf32>
    %20 = arith.addf %17, %19 : vector<8x128xf32>
    %c0_17 = arith.constant 0 : index
    %c0_18 = arith.constant 0 : index
    %21 = vector.load %arg9[%c0_17, %c0_18] : memref<8x128xf32, #tpu.memory_space<vmem>>, vector<8x128xf32>
    tpu.vector_store %arg9[%c0_17, %c0_18], %20 {strides = array<i32>} : memref<8x128xf32, #tpu.memory_space<vmem>>, vector<8x128xf32>,
    return
  }
  func.func @transform_0(%arg0: i32) -> (i32, i32) {
    %c0_i32 = arith.constant 0 : i32
    %c0_i32_0 = arith.constant 0 : i32
    return %arg0, %c0_i32 : i32, i32
  }
  func.func @transform_1(%arg0: i32) -> (i32, i32) {
    %c0_i32 = arith.constant 0 : i32
    %c0_i32_0 = arith.constant 0 : i32
    %c0_i32_1 = arith.constant 0 : i32
    return %c0_i32, %c0_i32_0 : i32, i32
  }
  func.func @transform_2(%arg0: i32) -> (i32, i32) {
    %c0_i32 = arith.constant 0 : i32
    %c0_i32_0 = arith.constant 0 : i32
    %c0_i32_1 = arith.constant 0 : i32
    return %c0_i32, %c0_i32_0 : i32, i32
  }
  func.func @transform_3(%arg0: i32) -> (i32, i32) {
    %c0_i32 = arith.constant 0 : i32
    %c0_i32_0 = arith.constant 0 : i32
    %c0_i32_1 = arith.constant 0 : i32
    return %c0_i32, %c0_i32_0 : i32, i32
  }
  func.func @transform_4(%arg0: i32) -> (i32, i32) {
    %c0_i32 = arith.constant 0 : i32
    %c0_i32_0 = arith.constant 0 : i32
    %c0_i32_1 = arith.constant 0 : i32
    return %c0_i32, %c0_i32_0 : i32, i32
  }
  func.func @transform_5(%arg0: i32) -> (i32, i32) {
    %c0_i32 = arith.constant 0 : i32
    %c0_i32_0 = arith.constant 0 : i32
    %c0_i32_1 = arith.constant 0 : i32
    return %c0_i32, %c0_i32_0 : i32, i32
  }
  func.func @transform_6(%arg0: i32) -> (i32, i32) {
    %c0_i32 = arith.constant 0 : i32
    %c0_i32_0 = arith.constant 0 : i32
    %c0_i32_1 = arith.constant 0 : i32
    return %c0_i32, %c0_i32_0 : i32, i32
  }
  func.func @transform_7(%arg0: i32) -> (i32, i32) {
    %c0_i32 = arith.constant 0 : i32
    %c0_i32_0 = arith.constant 0 : i32
    return %arg0, %c0_i32 : i32, i32
  }
  func.func @transform_8(%arg0: i32) -> (i32, i32) {
    %c0_i32 = arith.constant 0 : i32
    %c0_i32_0 = arith.constant 0 : i32
    return %arg0, %c0_i32 : i32, i32
  }
}

</mosaic_0001>

<llo_original>
// kernel: tpu_custom_call.1
$region0: #{tpu_custom_call.1}
  #allocation0 [shape = 'u32[]', space=smem, size = 0x4, offset = 0x4, fixed_abs, tag = 'smem constant byte address 0x4 - core index']
  #allocation1 [shape = 'u32[72,128]{1,0:T(1,128)}', space=vmem, size = 0x9000, scoped, tag = 'internal scratch']
  %s0 = inlined_call_operand.hbm [shape: bf16[8,128], index: 0, kind: input, shape index: {}]
  %s1 = inlined_call_operand.hbm [shape: bf16[128,128], index: 1, kind: input, shape index: {}]
  %s2 = inlined_call_operand.vmem [shape: f32[1,128], index: 2, kind: input, shape index: {}]
  %s3 = inlined_call_operand.hbm [shape: bf16[128,128], index: 3, kind: input, shape index: {}]
  %s4 = inlined_call_operand.vmem [shape: f32[1,128], index: 4, kind: input, shape index: {}]
  %s5 = inlined_call_operand.hbm [shape: bf16[128,128], index: 5, kind: input, shape index: {}]
  %s6 = inlined_call_operand.vmem [shape: f32[1,128], index: 6, kind: input, shape index: {}]
  %s7 = inlined_call_operand.hbm [shape: f32[8,128], index: 7, kind: output, shape index: {0}]
  %s8 = inlined_call_operand.hbm [shape: f32[8,128], index: 8, kind: output, shape index: {1}]
  %9 = xla_tuple %s7, %s8
  %s10 = sld [smem:[#allocation0]]
  $region62: #{tpu_custom_call.1} parent=0
    _
  %s12 = ssub.s32 1, %s10
  %s13 = scalar_select 0, %s12, %s10
  $region1: #{tpu_custom_call.1} parent=0
    #allocation2 [shape = 'u8[2048]{0}', space=vmem, size = 0x800, scoped, tag = 'input window, operand 0, single buffered']
    #allocation3 [shape = 's32[1]{0}', space=sflag, size = 0x4, scoped, tag = 'scoped memory for tpu_custom_call.1']
    #allocation4 [shape = 's32[1]{0}', space=sflag, size = 0x4, scoped, tag = 'scoped memory for tpu_custom_call.1']
    #allocation5 [shape = 'u8[32768]{0}', space=vmem, size = 0x8000, scoped, tag = 'input window, operand 1, single buffered']
    #allocation6 [shape = 's32[1]{0}', space=sflag, size = 0x4, scoped, tag = 'scoped memory for tpu_custom_call.1']
    #allocation7 [shape = 'u8[32768]{0}', space=vmem, size = 0x8000, scoped, tag = 'input window, operand 3, single buffered']
    #allocation8 [shape = 'u8[32768]{0}', space=vmem, size = 0x8000, scoped, tag = 'input window, operand 5, single buffered']
    #allocation9 [shape = 's32[1]{0}', space=sflag, size = 0x4, scoped, tag = 'scoped memory for tpu_custom_call.1']
    #allocation10 [shape = 'u8[4096]{0}', space=vmem, size = 0x1000, scoped, tag = 'output window, operand 0, single buffered']
    #allocation11 [shape = 'u8[4096]{0}', space=vmem, size = 0x1000, scoped, tag = 'output window, operand 1, single buffered']
    #allocation12 [shape = 's32[1]{0}', space=sflag, size = 0x4, scoped, tag = 'scoped memory for tpu_custom_call.1']
    %14 = vsyncpa [#allocation3], 0
    %15 = vsyncpa [#allocation6], 0
    %16 = vsyncpa [#allocation9], 0
    %17 = vsyncpa [#allocation4], 0
    %18 = vsyncpa [#allocation12], 0
    // Predicated region
    $region2: #{tpu_custom_call.1} parent=1 // pred_check
      _
    $region3: #{tpu_custom_call.1} parent=1 // pred_check_branch
      %20 = sbr.rel (0) target = $region5
    $region4: #{tpu_custom_call.1} parent=1 // pred_region
      %22 = vsyncadd [#allocation3], 0
      %s24 = sshll.u32 %s0, 4
      %s25 = int_to_ptr.hbm [resolvable:$true] %s24
      %s26 = sshll.u32 [#allocation2], 4
      %s27 = int_to_ptr.vmem [resolvable:$true] %s26
      %29 = dma.hbm_to_vmem [thread:$0]  %s25, 64, %s27, [#allocation3]
    $region5: #{tpu_custom_call.1} parent=1 // pred_fallthru
      _
    // Predicated region
    $region6: #{tpu_custom_call.1} parent=1 // pred_check
      _
    $region7: #{tpu_custom_call.1} parent=1 // pred_check_branch
      %31 = sbr.rel (0) target = $region9
    $region8: #{tpu_custom_call.1} parent=1 // pred_region
      %33 = vsyncadd [#allocation6], 0
      %s34 = sshll.u32 %s1, 4
      %s35 = int_to_ptr.hbm [resolvable:$true] %s34
      %s36 = sshll.u32 [#allocation5], 4
      %s37 = int_to_ptr.vmem [resolvable:$true] %s36
      %42 = dma.hbm_to_vmem [thread:$0]  %s35, 1024, %s37, [#allocation6], 64, 64, 4
    $region9: #{tpu_custom_call.1} parent=1 // pred_fallthru
      _
    // Predicated region
    $region10: #{tpu_custom_call.1} parent=1 // pred_check
      _
    $region11: #{tpu_custom_call.1} parent=1 // pred_check_branch
      %44 = sbr.rel (0) target = $region13
    $region12: #{tpu_custom_call.1} parent=1 // pred_region
      _
    $region13: #{tpu_custom_call.1} parent=1 // pred_fallthru
      _
    // Predicated region
    $region14: #{tpu_custom_call.1} parent=1 // pred_check
      _
    $region15: #{tpu_custom_call.1} parent=1 // pred_check_branch
      %46 = sbr.rel (0) target = $region17
    $region16: #{tpu_custom_call.1} parent=1 // pred_region
      %48 = vsyncadd [#allocation6], 0
      %s49 = sshll.u32 %s3, 4
      %s50 = int_to_ptr.hbm [resolvable:$true] %s49
      %s51 = sshll.u32 [#allocation7], 4
      %s52 = int_to_ptr.vmem [resolvable:$true] %s51
      %57 = dma.hbm_to_vmem [thread:$0]  %s50, 1024, %s52, [#allocation6], 64, 64, 4
    $region17: #{tpu_custom_call.1} parent=1 // pred_fallthru
      _
    // Predicated region
    $region18: #{tpu_custom_call.1} parent=1 // pred_check
      _
    $region19: #{tpu_custom_call.1} parent=1 // pred_check_branch
      %59 = sbr.rel (0) target = $region21
    $region20: #{tpu_custom_call.1} parent=1 // pred_region
      _
    $region21: #{tpu_custom_call.1} parent=1 // pred_fallthru
      _
    // Predicated region
    $region22: #{tpu_custom_call.1} parent=1 // pred_check
      _
    $region23: #{tpu_custom_call.1} parent=1 // pred_check_branch
      %61 = sbr.rel (0) target = $region25
    $region24: #{tpu_custom_call.1} parent=1 // pred_region
      %63 = vsyncadd [#allocation9], 0
      %s64 = sshll.u32 %s5, 4
      %s65 = int_to_ptr.hbm [resolvable:$true] %s64
      %s66 = sshll.u32 [#allocation8], 4
      %s67 = int_to_ptr.vmem [resolvable:$true] %s66
      %72 = dma.hbm_to_vmem [thread:$0]  %s65, 1024, %s67, [#allocation9], 64, 64, 4
    $region25: #{tpu_custom_call.1} parent=1 // pred_fallthru
      _
    // Predicated region
    $region26: #{tpu_custom_call.1} parent=1 // pred_check
      _
    $region27: #{tpu_custom_call.1} parent=1 // pred_check_branch
      %74 = sbr.rel (0) target = $region29
    $region28: #{tpu_custom_call.1} parent=1 // pred_region
      _
    $region29: #{tpu_custom_call.1} parent=1 // pred_fallthru
      _
    // Predicated region
    $region30: #{tpu_custom_call.1} parent=1 // pred_check
      _
    $region31: #{tpu_custom_call.1} parent=1 // pred_check_branch
      %76 = sbr.rel (0) target = $region33
    $region32: #{tpu_custom_call.1} parent=1 // pred_region
      %78 = dma.done [#allocation3], 64
    $region33: #{tpu_custom_call.1} parent=1 // pred_fallthru
      _
    // Predicated region
    $region34: #{tpu_custom_call.1} parent=1 // pred_check
      _
    $region35: #{tpu_custom_call.1} parent=1 // pred_check_branch
      %80 = sbr.rel (0) target = $region37
    $region36: #{tpu_custom_call.1} parent=1 // pred_region
      %82 = dma.done [#allocation6], 1024
    $region37: #{tpu_custom_call.1} parent=1 // pred_fallthru
      _
    // Predicated region
    $region38: #{tpu_custom_call.1} parent=1 // pred_check
      _
    $region39: #{tpu_custom_call.1} parent=1 // pred_check_branch
      %84 = sbr.rel (0) target = $region41
    $region40: #{tpu_custom_call.1} parent=1 // pred_region
      %86 = dma.done [#allocation6], 1024
    $region41: #{tpu_custom_call.1} parent=1 // pred_fallthru
      _
    // Predicated region
    $region42: #{tpu_custom_call.1} parent=1 // pred_check
      _
    $region43: #{tpu_custom_call.1} parent=1 // pred_check_branch
      %88 = sbr.rel (0) target = $region45
    $region44: #{tpu_custom_call.1} parent=1 // pred_region
      %90 = dma.done [#allocation9], 1024
    $region45: #{tpu_custom_call.1} parent=1 // pred_fallthru
      _
    %v91 = vld [vmem:[#allocation2] sm:$0xf]
    %v92 = vld [vmem:[#allocation5] sm:$0xf]
    %v93 = vld [vmem:[#allocation5 + $0x4] sm:$0xf]
    %v94 = vld [vmem:[#allocation5 + $0x8] sm:$0xf]
    %v95 = vld [vmem:[#allocation5 + $0xc] sm:$0xf]
    %v96 = vld [vmem:[#allocation5 + $0x10] sm:$0xf]
    %v97 = vld [vmem:[#allocation5 + $0x14] sm:$0xf]
    %v98 = vld [vmem:[#allocation5 + $0x18] sm:$0xf]
    %v99 = vld [vmem:[#allocation5 + $0x1c] sm:$0xf]
    %v100 = vld [vmem:[#allocation5 + $0x20] sm:$0xf]
    %v101 = vld [vmem:[#allocation5 + $0x24] sm:$0xf]
    %v102 = vld [vmem:[#allocation5 + $0x28] sm:$0xf]
    %v103 = vld [vmem:[#allocation5 + $0x2c] sm:$0xf]
    %v104 = vld [vmem:[#allocation5 + $0x30] sm:$0xf]
    %v105 = vld [vmem:[#allocation5 + $0x34] sm:$0xf]
    %v106 = vld [vmem:[#allocation5 + $0x38] sm:$0xf]
    %v107 = vld [vmem:[#allocation5 + $0x3c] sm:$0xf]
    %v108 = vld [vmem:[%s2] sm:$0x1]
    %v110 = vperm.slane %v108, 0
    %v128 = vunpack.c.l.b16 %v92
    %v129 = vunpack.c.l.b16 %v93
    %v130 = vunpack.c.l.b16 %v94
    %v131 = vunpack.c.l.b16 %v95
    %v132 = vunpack.c.l.b16 %v96
    %v133 = vunpack.c.l.b16 %v97
    %v134 = vunpack.c.l.b16 %v98
    %v135 = vunpack.c.l.b16 %v99
    %v136 = vunpack.c.l.b16 %v100
    %v137 = vunpack.c.l.b16 %v101
    %v138 = vunpack.c.l.b16 %v102
    %v139 = vunpack.c.l.b16 %v103
    %v140 = vunpack.c.l.b16 %v104
    %v141 = vunpack.c.l.b16 %v105
    %v142 = vunpack.c.l.b16 %v106
    %v143 = vunpack.c.l.b16 %v107
    %v144 = vpack.c.b16 %v129, %v128
    %v145 = vpack.c.b16 %v131, %v130
    %v146 = vpack.c.b16 %v133, %v132
    %v147 = vpack.c.b16 %v135, %v134
    %v148 = vpack.c.b16 %v137, %v136
    %v149 = vpack.c.b16 %v139, %v138
    %v150 = vpack.c.b16 %v141, %v140
    %v151 = vpack.c.b16 %v143, %v142
    %160 = vmatpush.bf16.msra.mxu0 %v151
    %161 = vmatpush.bf16.msra.mxu0 %v150
    %162 = vmatpush.bf16.msra.mxu0 %v149
    %163 = vmatpush.bf16.msra.mxu0 %v148
    %164 = vmatpush.bf16.msra.mxu0 %v147
    %165 = vmatpush.bf16.msra.mxu0 %v146
    %166 = vmatpush.bf16.msra.mxu0 %v145
    %167 = vmatpush.bf16.msra.mxu0 %v144
    %168 = vmatmul.bf16.gmra.mxu0 %v91
    %v169 = vpop.f32.mrf.mxu0
    %v170 = vadd.f32 %v110, %v169
    %v171 = vpop.f32.mrf.mxu0
    %172 = vdwg.mxu0
    %v173 = vtanh.pop %v170
    %v174 = vpack.c.bf16 %v173, %v173
    %v175 = vld [vmem:[#allocation7] sm:$0xf]
    %v176 = vld [vmem:[#allocation7 + $0x4] sm:$0xf]
    %v177 = vld [vmem:[#allocation7 + $0x8] sm:$0xf]
    %v178 = vld [vmem:[#allocation7 + $0xc] sm:$0xf]
    %v179 = vld [vmem:[#allocation7 + $0x10] sm:$0xf]
    %v180 = vld [vmem:[#allocation7 + $0x14] sm:$0xf]
    %v181 = vld [vmem:[#allocation7 + $0x18] sm:$0xf]
    %v182 = vld [vmem:[#allocation7 + $0x1c] sm:$0xf]
    %v183 = vld [vmem:[#allocation7 + $0x20] sm:$0xf]
    %v184 = vld [vmem:[#allocation7 + $0x24] sm:$0xf]
    %v185 = vld [vmem:[#allocation7 + $0x28] sm:$0xf]
    %v186 = vld [vmem:[#allocation7 + $0x2c] sm:$0xf]
    %v187 = vld [vmem:[#allocation7 + $0x30] sm:$0xf]
    %v188 = vld [vmem:[#allocation7 + $0x34] sm:$0xf]
    %v189 = vld [vmem:[#allocation7 + $0x38] sm:$0xf]
    %v190 = vld [vmem:[#allocation7 + $0x3c] sm:$0xf]
    %v191 = vld [vmem:[%s4] sm:$0x1]
    %v193 = vperm.slane %v191, 0
    %v211 = vunpack.c.l.b16 %v175
    %v212 = vunpack.c.l.b16 %v176
    %v213 = vunpack.c.l.b16 %v177
    %v214 = vunpack.c.l.b16 %v178
    %v215 = vunpack.c.l.b16 %v179
    %v216 = vunpack.c.l.b16 %v180
    %v217 = vunpack.c.l.b16 %v181
    %v218 = vunpack.c.l.b16 %v182
    %v219 = vunpack.c.l.b16 %v183
    %v220 = vunpack.c.l.b16 %v184
    %v221 = vunpack.c.l.b16 %v185
    %v222 = vunpack.c.l.b16 %v186
    %v223 = vunpack.c.l.b16 %v187
    %v224 = vunpack.c.l.b16 %v188
    %v225 = vunpack.c.l.b16 %v189
    %v226 = vunpack.c.l.b16 %v190
    %v227 = vpack.c.b16 %v212, %v211
    %v228 = vpack.c.b16 %v214, %v213
    %v229 = vpack.c.b16 %v216, %v215
    %v230 = vpack.c.b16 %v218, %v217
    %v231 = vpack.c.b16 %v220, %v219
    %v232 = vpack.c.b16 %v222, %v221
    %v233 = vpack.c.b16 %v224, %v223
    %v234 = vpack.c.b16 %v226, %v225
    %243 = vmatpush.bf16.msra.mxu0 %v234
    %244 = vmatpush.bf16.msra.mxu0 %v233
    %245 = vmatpush.bf16.msra.mxu0 %v232
    %246 = vmatpush.bf16.msra.mxu0 %v231
    %247 = vmatpush.bf16.msra.mxu0 %v230
    %248 = vmatpush.bf16.msra.mxu0 %v229
    %249 = vmatpush.bf16.msra.mxu0 %v228
    %250 = vmatpush.bf16.msra.mxu0 %v227
    %251 = vmatmul.bf16.gmra.mxu0 %v174
    %v252 = vpop.f32.mrf.mxu0
    %v253 = vadd.f32 %v193, %v252
    %v254 = vpop.f32.mrf.mxu0
    %255 = vdwg.mxu0
    %v256 = vtanh.pop %v253
    %257 = vst [vmem:[#allocation10] sm:$0xff] %v256
    %v258 = vpack.c.bf16 %v256, %v256
    %v259 = vld [vmem:[#allocation8] sm:$0xf]
    %v260 = vld [vmem:[#allocation8 + $0x4] sm:$0xf]
    %v261 = vld [vmem:[#allocation8 + $0x8] sm:$0xf]
    %v262 = vld [vmem:[#allocation8 + $0xc] sm:$0xf]
    %v263 = vld [vmem:[#allocation8 + $0x10] sm:$0xf]
    %v264 = vld [vmem:[#allocation8 + $0x14] sm:$0xf]
    %v265 = vld [vmem:[#allocation8 + $0x18] sm:$0xf]
    %v266 = vld [vmem:[#allocation8 + $0x1c] sm:$0xf]
    %v267 = vld [vmem:[#allocation8 + $0x20] sm:$0xf]
    %v268 = vld [vmem:[#allocation8 + $0x24] sm:$0xf]
    %v269 = vld [vmem:[#allocation8 + $0x28] sm:$0xf]
    %v270 = vld [vmem:[#allocation8 + $0x2c] sm:$0xf]
    %v271 = vld [vmem:[#allocation8 + $0x30] sm:$0xf]
    %v272 = vld [vmem:[#allocation8 + $0x34] sm:$0xf]
    %v273 = vld [vmem:[#allocation8 + $0x38] sm:$0xf]
    %v274 = vld [vmem:[#allocation8 + $0x3c] sm:$0xf]
    %v275 = vld [vmem:[%s6] sm:$0x1]
    %v277 = vperm.slane %v275, 0
    %v295 = vunpack.c.l.b16 %v259
    %v296 = vunpack.c.l.b16 %v260
    %v297 = vunpack.c.l.b16 %v261
    %v298 = vunpack.c.l.b16 %v262
    %v299 = vunpack.c.l.b16 %v263
    %v300 = vunpack.c.l.b16 %v264
    %v301 = vunpack.c.l.b16 %v265
    %v302 = vunpack.c.l.b16 %v266
    %v303 = vunpack.c.l.b16 %v267
    %v304 = vunpack.c.l.b16 %v268
    %v305 = vunpack.c.l.b16 %v269
    %v306 = vunpack.c.l.b16 %v270
    %v307 = vunpack.c.l.b16 %v271
    %v308 = vunpack.c.l.b16 %v272
    %v309 = vunpack.c.l.b16 %v273
    %v310 = vunpack.c.l.b16 %v274
    %v311 = vpack.c.b16 %v296, %v295
    %v312 = vpack.c.b16 %v298, %v297
    %v313 = vpack.c.b16 %v300, %v299
    %v314 = vpack.c.b16 %v302, %v301
    %v315 = vpack.c.b16 %v304, %v303
    %v316 = vpack.c.b16 %v306, %v305
    %v317 = vpack.c.b16 %v308, %v307
    %v318 = vpack.c.b16 %v310, %v309
    %327 = vmatpush.bf16.msra.mxu0 %v318
    %328 = vmatpush.bf16.msra.mxu0 %v317
    %329 = vmatpush.bf16.msra.mxu0 %v316
    %330 = vmatpush.bf16.msra.mxu0 %v315
    %331 = vmatpush.bf16.msra.mxu0 %v314
    %332 = vmatpush.bf16.msra.mxu0 %v313
    %333 = vmatpush.bf16.msra.mxu0 %v312
    %334 = vmatpush.bf16.msra.mxu0 %v311
    %335 = vmatmul.bf16.gmra.mxu0 %v258
    %v336 = vpop.f32.mrf.mxu0
    %v337 = vadd.f32 %v277, %v336
    %v338 = vpop.f32.mrf.mxu0
    %339 = vdwg.mxu0
    %340 = vst [vmem:[#allocation11] sm:$0xff] %v337
    // Predicated region
    $region46: #{tpu_custom_call.1} parent=1 // pred_check
      _
    $region47: #{tpu_custom_call.1} parent=1 // pred_check_branch
      %342 = sbr.rel (0) target = $region49
    $region48: #{tpu_custom_call.1} parent=1 // pred_region
      %344 = vsyncadd [#allocation4], 0
      %s346 = sshll.u32 [#allocation10], 4
      %s347 = int_to_ptr.vmem [resolvable:$true] %s346
      %s348 = sshll.u32 %s7, 4
      %s349 = int_to_ptr.hbm [resolvable:$true] %s348
      %351 = dma.vmem_to_hbm [thread:$0]  %s347, 128, %s349, [#allocation4]
    $region49: #{tpu_custom_call.1} parent=1 // pred_fallthru
      _
    // Predicated region
    $region50: #{tpu_custom_call.1} parent=1 // pred_check
      _
    $region51: #{tpu_custom_call.1} parent=1 // pred_check_branch
      %353 = sbr.rel (0) target = $region53
    $region52: #{tpu_custom_call.1} parent=1 // pred_region
      %355 = vsyncadd [#allocation12], 0
      %s357 = sshll.u32 [#allocation11], 4
      %s358 = int_to_ptr.vmem [resolvable:$true] %s357
      %s359 = sshll.u32 %s8, 4
      %s360 = int_to_ptr.hbm [resolvable:$true] %s359
      %362 = dma.vmem_to_hbm [thread:$0]  %s358, 128, %s360, [#allocation12]
    $region53: #{tpu_custom_call.1} parent=1 // pred_fallthru
      _
    // Predicated region
    $region54: #{tpu_custom_call.1} parent=1 // pred_check
      _
    $region55: #{tpu_custom_call.1} parent=1 // pred_check_branch
      %364 = sbr.rel (0) target = $region57
    $region56: #{tpu_custom_call.1} parent=1 // pred_region
      %366 = dma.done [#allocation4], 128
    $region57: #{tpu_custom_call.1} parent=1 // pred_fallthru
      _
    // Predicated region
    $region58: #{tpu_custom_call.1} parent=1 // pred_check
      _
    $region59: #{tpu_custom_call.1} parent=1 // pred_check_branch
      %368 = sbr.rel (0) target = $region61
    $region60: #{tpu_custom_call.1} parent=1 // pred_region
      %370 = dma.done [#allocation12], 128
    $region61: #{tpu_custom_call.1} parent=1 // pred_fallthru
      _
    %371 = vsyncpa [#allocation3], 1
    %372 = vsyncpa [#allocation6], 1
    %373 = vsyncpa [#allocation9], 1
    %374 = vsyncpa [#allocation4], 1
    %375 = vsyncpa [#allocation12], 1

</llo_original>
